<compile_context>
chip_gen: v5e
topology: v5e:2x2
jax: 0.10.0
libtpu: 0.0.40
codegen_flags: <defaults>
</compile_context>

<pallas_src>
import jax
import jax.numpy as jnp
from jax.experimental import pallas as pl
from jax.experimental.pallas import tpu as pltpu


# ---------------- Pallas kernel ----------------

def _make_mha_kernel(num_heads, depth, with_weights, mm_dtype):
    """Fused per-batch MHA kernel (grid = (B,)).

    Blocks seen by the kernel:
      q/k/v       : [1, S, d]   f32 activations
      wq/wk/wv/fw : [d, d]      pre-transposed, resident across the grid
                                (bf16 when use_bf16_matmul)
      fb          : [1, d]      f32 bias
      o           : [1, S, d]
      aw          : [1, H, S, S]  (only when with_weights)
      ctx_scr     : VMEM [S, d] f32 merged-heads context (fed to fc_out)
    """
    f32 = jnp.float32

    def compute(q_ref, k_ref, v_ref, wq_ref, wk_ref, wv_ref,
                fw_ref, fb_ref, o_ref, aw_ref, ctx_scr):
        # All-head projections as lane-dense [S, d] @ [d, d] matmuls
        # (bf16 operands, f32 accumulation). Scale is folded into wq.
        xq = q_ref[0].astype(mm_dtype)
        xk = k_ref[0].astype(mm_dtype)
        xv = v_ref[0].astype(mm_dtype)
        qp = jnp.dot(xq, wq_ref[...], preferred_element_type=f32)   # [S, d]
        kp = jnp.dot(xk, wk_ref[...], preferred_element_type=f32)
        vp = jnp.dot(xv, wv_ref[...], preferred_element_type=f32)

        # Static per-head loop (num_heads is a compile-time constant) -> every
        # head slice is a static lane-dim slice, no dynamic lane indexing.
        # TODO(synk): KV-tile this flash-style for long S (v7x 64 MiB VMEM).
        for h in range(num_heads):
            sl = slice(h * depth, (h + 1) * depth)
            qh = qp[:, sl].astype(mm_dtype)
            kh = kp[:, sl].astype(mm_dtype)
            vh = vp[:, sl].astype(mm_dtype)

            # Scores: contract the shared depth axis directly (no transpose).
            s = jax.lax.dot_general(
                qh, kh, dimension_numbers=(((1,), (1,)), ((), ())),
                preferred_element_type=f32)                          # [S, S]

            # Numerically-stable softmax, strictly f32 elementwise (v5e-safe).
            m = jnp.max(s, axis=-1, keepdims=True)
            e = jnp.exp(s - m)
            l = jnp.sum(e, axis=-1, keepdims=True)

            if with_weights:
                # Exact normalization: returned weights are an API contract.
                p = e / l
                aw_ref[0, h] = p.astype(aw_ref.dtype)
                ctx = jnp.dot(p.astype(mm_dtype), vh,
                              preferred_element_type=f32)            # [S, depth]
            else:
                # Fast path: normalize AFTER the PV matmul -> O(S*depth) VPU
                # multiplies instead of O(S^2); approx recip runs on the EUP.
                acc = jnp.dot(e.astype(mm_dtype), vh,
                              preferred_element_type=f32)
                ctx = acc * pl.reciprocal(l, approx=True)

            ctx_scr[:, sl] = ctx                                      # merge heads

        # ONE dense fc_out matmul over the merged heads: [S, d] @ [d, d].
        out = jnp.dot(ctx_scr[...].astype(mm_dtype), fw_ref[...],
                      preferred_element_type=f32)
        o_ref[0] = out + fb_ref[...]

    if with_weights:
        def kernel(q_ref, k_ref, v_ref, wq_ref, wk_ref, wv_ref,
                   fw_ref, fb_ref, o_ref, aw_ref, ctx_scr):
            compute(q_ref, k_ref, v_ref, wq_ref, wk_ref, wv_ref,
                    fw_ref, fb_ref, o_ref, aw_ref, ctx_scr)
        return kernel

    def kernel(q_ref, k_ref, v_ref, wq_ref, wk_ref, wv_ref,
               fw_ref, fb_ref, o_ref, ctx_scr):
        compute(q_ref, k_ref, v_ref, wq_ref, wk_ref, wv_ref,
                fw_ref, fb_ref, o_ref, None, ctx_scr)
    return kernel


# ---------------- wrapper ----------------

def multi_head_attention(params, q, k, v, num_heads,
                         return_attention_weights=True,
                         use_bf16_matmul=True,
                         attention_weights_dtype=jnp.float32):
    """Forward pass of MultiHeadAttention.

    q, k, v: [B, S, d]
    returns (output [B, S, d] f32, attention_weights [B, H, S, S] or None)
    """
    B, S, d = q.shape
    assert d % num_heads == 0, "d must be divisible by num_heads"
    depth = d // num_heads
    scale = 1.0 / float(depth) ** 0.5
    mm_dtype = jnp.bfloat16 if use_bf16_matmul else jnp.float32

    # One-time host-side weight prep (PyTorch Linear stores [d_out, d_in]):
    # transpose so every kernel matmul is plain x @ w; fold 1/sqrt(depth)
    # into wq; store in the matmul dtype (bf16 halves weight HBM traffic).
    wq_t = (params["wq"].T * scale).astype(mm_dtype)
    wk_t = params["wk"].T.astype(mm_dtype)
    wv_t = params["wv"].T.astype(mm_dtype)
    fw_t = params["fc_w"].T.astype(mm_dtype)
    fb = params["fc_b"].reshape(1, d).astype(jnp.float32)

    grid = (B,)
    qkv_spec = pl.BlockSpec((1, S, d), lambda b: (b, 0, 0))
    # Full-array weight blocks with a constant index_map: DMA'd once, resident
    # across the whole grid (no per-step re-fetch).
    w_spec = pl.BlockSpec((d, d), lambda b: (0, 0))
    fb_spec = pl.BlockSpec((1, d), lambda b: (0, 0))
    out_spec = pl.BlockSpec((1, S, d), lambda b: (b, 0, 0))
    aw_spec = pl.BlockSpec((1, num_heads, S, S), lambda b: (b, 0, 0, 0))

    if return_attention_weights:
        out_shape = (jax.ShapeDtypeStruct((B, S, d), jnp.float32),
                     jax.ShapeDtypeStruct((B, num_heads, S, S),
                                          attention_weights_dtype))
        out_specs = (out_spec, aw_spec)
    else:
        out_shape = jax.ShapeDtypeStruct((B, S, d), jnp.float32)
        out_specs = out_spec

    # VMEM budget: double-buffered activation/output/aw blocks + resident
    # weights + projected Q/K/V + [S,S] softmax temporaries + ctx scratch,
    # with headroom, clamped to ~85% of this chip's physical VMEM.
    w_item = jnp.dtype(mm_dtype).itemsize
    aw_item = jnp.dtype(attention_weights_dtype).itemsize
    blk_bytes = (2 * 3 * S * d * 4                 # q, k, v input blocks (x2 buf)
                 + 2 * (4 * d * d * w_item + d * 4)  # weights + bias
                 + 2 * S * d * 4                   # output block (x2 buf)
                 + (2 * num_heads * S * S * aw_item
                    if return_attention_weights else 0)
                 + 3 * S * d * 4                   # projected Q/K/V live values
                 + 4 * S * S * 4                   # scores / softmax temporaries
                 + S * d * 4)                      # ctx scratch
    try:
        phys_vmem = int(pltpu.get_tpu_info().vmem_capacity_bytes)
    except Exception:
        phys_vmem = 64 << 20                       # conservative (v7x per-TC)
    vmem_limit = int(min(max(blk_bytes + (8 << 20), 32 << 20),
                         int(phys_vmem * 0.85)))

    result = pl.pallas_call(
        _make_mha_kernel(num_heads, depth, return_attention_weights, mm_dtype),
        grid=grid,
        in_specs=[qkv_spec, qkv_spec, qkv_spec,
                  w_spec, w_spec, w_spec, w_spec, fb_spec],
        out_specs=out_specs,
        out_shape=out_shape,
        scratch_shapes=[pltpu.VMEM((S, d), jnp.float32)],
        compiler_params=pltpu.CompilerParams(
            dimension_semantics=("parallel",),
            vmem_limit_bytes=vmem_limit,
        ),
    )(q, k, v, wq_t, wk_t, wv_t, fw_t, fb)

    if return_attention_weights:
        out, attn_w = result
        return out, attn_w
    return result, None


# ---------------- reference (pure JAX, highest precision) ----------------

def _reference(params, q, k, v, num_heads):
    B, S, d = q.shape
    depth = d // num_heads
    hp = jax.lax.Precision.HIGHEST
    qp = jnp.einsum("bsi,oi->bso", q, params["wq"], precision=hp)
    kp = jnp.einsum("bsi,oi->bso", k, params["wk"], precision=hp)
    vp = jnp.einsum("bsi,oi->bso", v, params["wv"], precision=hp)

    def split(x):
        return x.reshape(B, S, num_heads, depth).transpose(0, 2, 1, 3)

    qh, kh, vh = split(qp), split(kp), split(vp)
    logits = jnp.einsum("bhqd,bhkd->bhqk", qh, kh,
                        precision=hp) / jnp.sqrt(jnp.float32(depth))
    w = jax.nn.softmax(logits, axis=-1)
    o = jnp.einsum("bhqk,bhkd->bhqd", w, vh, precision=hp)
    o = o.transpose(0, 2, 1, 3).reshape(B, S, d)
    out = jnp.einsum("bsi,oi->bso", o, params["fc_w"], precision=hp)
    return out + params["fc_b"], w


# ---------------- main ----------------

if __name__ == "__main__":

    def run_case(B, S, d, H, seed=0):
        key = jax.random.PRNGKey(seed)
        ks = jax.random.split(key, 8)
        init_scale = 1.0 / jnp.sqrt(jnp.float32(d))
        params = {
            "wq": jax.random.uniform(ks[0], (d, d), jnp.float32, -init_scale, init_scale),
            "wk": jax.random.uniform(ks[1], (d, d), jnp.float32, -init_scale, init_scale),
            "wv": jax.random.uniform(ks[2], (d, d), jnp.float32, -init_scale, init_scale),
            "fc_w": jax.random.uniform(ks[3], (d, d), jnp.float32, -init_scale, init_scale),
            "fc_b": jax.random.uniform(ks[4], (d,), jnp.float32, -init_scale, init_scale),
        }
        q = jax.random.normal(ks[5], (B, S, d), jnp.float32)
        k = jax.random.normal(ks[6], (B, S, d), jnp.float32)
        v = jax.random.normal(ks[7], (B, S, d), jnp.float32)

        ref_out, ref_w = _reference(params, q, k, v, H)

        # f32 MXU path: tight numerical check (exact softmax division).
        out32, w32 = multi_head_attention(params, q, k, v, H,
                                          use_bf16_matmul=False)
        out32 = jax.block_until_ready(out32)
        w32 = jax.block_until_ready(w32)
        assert out32.shape == (B, S, d) and w32.shape == (B, H, S, S)
        assert jnp.allclose(out32, ref_out, atol=2e-3, rtol=2e-3), (
            float(jnp.max(jnp.abs(out32 - ref_out))))
        assert jnp.allclose(w32, ref_w, atol=2e-3, rtol=2e-3), (
            float(jnp.max(jnp.abs(w32 - ref_w))))

        # Default path: bf16 MXU operands, f32 accumulation (relaxed check).
        out16, w16 = multi_head_attention(params, q, k, v, H,
                                          use_bf16_matmul=True)
        out16 = jax.block_until_ready(out16)
        w16 = jax.block_until_ready(w16)
        assert jnp.allclose(out16, ref_out, atol=5e-2, rtol=5e-2), (
            float(jnp.max(jnp.abs(out16 - ref_out))))
        assert jnp.allclose(w16, ref_w, atol=2e-2, rtol=2e-2), (
            float(jnp.max(jnp.abs(w16 - ref_w))))

        # Output-only fast path: no O(B*H*S^2) weights writeback,
        # post-PV normalization with approx reciprocal.
        out_fast, no_w = multi_head_attention(params, q, k, v, H,
                                              return_attention_weights=False)
        out_fast = jax.block_until_ready(out_fast)
        assert no_w is None
        assert jnp.allclose(out_fast, ref_out, atol=5e-2, rtol=5e-2), (
            float(jnp.max(jnp.abs(out_fast - ref_out))))

    run_case(2, 8, 32, 4)       # single (8,128)-tile shapes
    run_case(2, 128, 256, 8)    # multi-tile shapes (S=128, d=256, depth=32)

    print("KERNEL_OK")
</pallas_src>

<mosaic_0001>
module attributes {stable_mosaic.version = 11 : i64} {
  func.func @kernel(%arg0: i32, %arg1: memref<1x8x32xf32, #tpu.memory_space<vmem>>, %arg2: memref<1x8x32xf32, #tpu.memory_space<vmem>>, %arg3: memref<1x8x32xf32, #tpu.memory_space<vmem>>, %arg4: memref<32x32xf32, #tpu.memory_space<vmem>>, %arg5: memref<32x32xf32, #tpu.memory_space<vmem>>, %arg6: memref<32x32xf32, #tpu.memory_space<vmem>>, %arg7: memref<32x32xf32, #tpu.memory_space<vmem>>, %arg8: memref<1x32xf32, #tpu.memory_space<vmem>>, %arg9: memref<1x8x32xf32, #tpu.memory_space<vmem>>, %arg10: memref<1x4x8x8xf32, #tpu.memory_space<vmem>>, %arg11: memref<8x32xf32, #tpu.memory_space<vmem>>) attributes {dimension_semantics = [#tpu.dimension_semantics<parallel>], iteration_bounds = array<i64: 2>, scalar_prefetch = 0 : i64, scratch_operands = 1 : i64, tpu.core_type = #tpu.core_type<tc>, window_params = [{transform_indices = @transform_0, window_bounds = array<i64: 1, 8, 32>}, {transform_indices = @transform_1, window_bounds = array<i64: 1, 8, 32>}, {transform_indices = @transform_2, window_bounds = array<i64: 1, 8, 32>}, {pipeline_mode = #tpu.pipeline_mode<synchronous>, transform_indices = @transform_3, window_bounds = array<i64: 32, 32>}, {pipeline_mode = #tpu.pipeline_mode<synchronous>, transform_indices = @transform_4, window_bounds = array<i64: 32, 32>}, {pipeline_mode = #tpu.pipeline_mode<synchronous>, transform_indices = @transform_5, window_bounds = array<i64: 32, 32>}, {pipeline_mode = #tpu.pipeline_mode<synchronous>, transform_indices = @transform_6, window_bounds = array<i64: 32, 32>}, {pipeline_mode = #tpu.pipeline_mode<synchronous>, transform_indices = @transform_7, window_bounds = array<i64: 1, 32>}, {transform_indices = @transform_8, window_bounds = array<i64: 1, 8, 32>}, {transform_indices = @transform_9, window_bounds = array<i64: 1, 4, 8, 8>}]} {
    %c0 = arith.constant 0 : index
    %c0_0 = arith.constant 0 : index
    %c0_1 = arith.constant 0 : index
    %0 = vector.load %arg1[%c0, %c0_0, %c0_1] : memref<1x8x32xf32, #tpu.memory_space<vmem>>, vector<1x8x32xf32>
    %1 = vector.shape_cast %0 : vector<1x8x32xf32> to vector<8x32xf32>
    %c0_2 = arith.constant 0 : index
    %c0_3 = arith.constant 0 : index
    %c0_4 = arith.constant 0 : index
    %2 = vector.load %arg2[%c0_2, %c0_3, %c0_4] : memref<1x8x32xf32, #tpu.memory_space<vmem>>, vector<1x8x32xf32>
    %3 = vector.shape_cast %2 : vector<1x8x32xf32> to vector<8x32xf32>
    %c0_5 = arith.constant 0 : index
    %c0_6 = arith.constant 0 : index
    %c0_7 = arith.constant 0 : index
    %4 = vector.load %arg3[%c0_5, %c0_6, %c0_7] : memref<1x8x32xf32, #tpu.memory_space<vmem>>, vector<1x8x32xf32>
    %5 = vector.shape_cast %4 : vector<1x8x32xf32> to vector<8x32xf32>
    %c0_8 = arith.constant 0 : index
    %c0_9 = arith.constant 0 : index
    %6 = vector.load %arg4[%c0_8, %c0_9] : memref<32x32xf32, #tpu.memory_space<vmem>>, vector<32x32xf32>
    %cst = arith.constant dense<0.000000e+00> : vector<8x32xf32>
    %7 = tpu.matmul %1, %6, %cst {dimension_numbers = #tpu.dot_dimension_numbers<[1], [0], [0], [1], [0, 0, 1, 1], [], []>} : vector<8x32xf32>, vector<32x32xf32>, vector<8x32xf32> -> vector<8x32xf32>
    %c0_10 = arith.constant 0 : index
    %c0_11 = arith.constant 0 : index
    %8 = vector.load %arg5[%c0_10, %c0_11] : memref<32x32xf32, #tpu.memory_space<vmem>>, vector<32x32xf32>
    %cst_12 = arith.constant dense<0.000000e+00> : vector<8x32xf32>
    %9 = tpu.matmul %3, %8, %cst_12 {dimension_numbers = #tpu.dot_dimension_numbers<[1], [0], [0], [1], [0, 0, 1, 1], [], []>} : vector<8x32xf32>, vector<32x32xf32>, vector<8x32xf32> -> vector<8x32xf32>
    %c0_13 = arith.constant 0 : index
    %c0_14 = arith.constant 0 : index
    %10 = vector.load %arg6[%c0_13, %c0_14] : memref<32x32xf32, #tpu.memory_space<vmem>>, vector<32x32xf32>
    %cst_15 = arith.constant dense<0.000000e+00> : vector<8x32xf32>
    %11 = tpu.matmul %5, %10, %cst_15 {dimension_numbers = #tpu.dot_dimension_numbers<[1], [0], [0], [1], [0, 0, 1, 1], [], []>} : vector<8x32xf32>, vector<32x32xf32>, vector<8x32xf32> -> vector<8x32xf32>
    %12 = vector.extract_strided_slice %7 {offsets = [0, 0], sizes = [8, 8], strides = [1, 1]} : vector<8x32xf32> to vector<8x8xf32>
    %13 = vector.extract_strided_slice %9 {offsets = [0, 0], sizes = [8, 8], strides = [1, 1]} : vector<8x32xf32> to vector<8x8xf32>
    %14 = vector.extract_strided_slice %11 {offsets = [0, 0], sizes = [8, 8], strides = [1, 1]} : vector<8x32xf32> to vector<8x8xf32>
    %cst_16 = arith.constant dense<0.000000e+00> : vector<8x8xf32>
    %15 = tpu.matmul %12, %13, %cst_16 {dimension_numbers = #tpu.dot_dimension_numbers<[1], [1], [0], [0], [0, 0, 1, 0], [], []>} : vector<8x8xf32>, vector<8x8xf32>, vector<8x8xf32> -> vector<8x8xf32>
    %cst_17 = arith.constant dense<0xFF800000> : vector<8xf32>
    %16 = vector.multi_reduction <maximumf>, %15, %cst_17 [1] : vector<8x8xf32> to vector<8xf32>
    %17 = vector.shape_cast %16 : vector<8xf32> to vector<8x1xf32>
    %18 = vector.broadcast %17 : vector<8x1xf32> to vector<8x8xf32>
    %19 = arith.subf %15, %18 : vector<8x8xf32>
    %20 = math.exp %19 : vector<8x8xf32>
    %cst_18 = arith.constant dense<0.000000e+00> : vector<8xf32>
    %21 = vector.multi_reduction <add>, %20, %cst_18 [1] : vector<8x8xf32> to vector<8xf32>
    %22 = vector.shape_cast %21 : vector<8xf32> to vector<8x1xf32>
    %23 = vector.broadcast %22 : vector<8x1xf32> to vector<8x8xf32>
    %24 = arith.divf %20, %23 : vector<8x8xf32>
    %c0_19 = arith.constant 0 : index
    %c0_20 = arith.constant 0 : index
    %c0_21 = arith.constant 0 : index
    %c0_22 = arith.constant 0 : index
    %25 = vector.load %arg10[%c0_19, %c0_20, %c0_21, %c0_22] : memref<1x4x8x8xf32, #tpu.memory_space<vmem>>, vector<1x1x8x8xf32>
    %26 = vector.shape_cast %25 : vector<1x1x8x8xf32> to vector<8x8xf32>
    %27 = vector.shape_cast %24 : vector<8x8xf32> to vector<1x1x8x8xf32>
    tpu.vector_store %arg10[%c0_19, %c0_20, %c0_21, %c0_22], %27 {strides = array<i32>} : memref<1x4x8x8xf32, #tpu.memory_space<vmem>>, vector<1x1x8x8xf32>,
    %cst_23 = arith.constant dense<0.000000e+00> : vector<8x8xf32>
    %28 = tpu.matmul %24, %14, %cst_23 {dimension_numbers = #tpu.dot_dimension_numbers<[1], [0], [0], [1], [0, 0, 1, 1], [], []>} : vector<8x8xf32>, vector<8x8xf32>, vector<8x8xf32> -> vector<8x8xf32>
    %c0_24 = arith.constant 0 : index
    %c0_25 = arith.constant 0 : index
    %29 = vector.load %arg11[%c0_24, %c0_25] : memref<8x32xf32, #tpu.memory_space<vmem>>, vector<8x8xf32>
    tpu.vector_store %arg11[%c0_24, %c0_25], %28 {strides = array<i32>} : memref<8x32xf32, #tpu.memory_space<vmem>>, vector<8x8xf32>,
    %30 = vector.extract_strided_slice %7 {offsets = [0, 8], sizes = [8, 8], strides = [1, 1]} : vector<8x32xf32> to vector<8x8xf32>
    %31 = vector.extract_strided_slice %9 {offsets = [0, 8], sizes = [8, 8], strides = [1, 1]} : vector<8x32xf32> to vector<8x8xf32>
    %32 = vector.extract_strided_slice %11 {offsets = [0, 8], sizes = [8, 8], strides = [1, 1]} : vector<8x32xf32> to vector<8x8xf32>
    %cst_26 = arith.constant dense<0.000000e+00> : vector<8x8xf32>
    %33 = tpu.matmul %30, %31, %cst_26 {dimension_numbers = #tpu.dot_dimension_numbers<[1], [1], [0], [0], [0, 0, 1, 0], [], []>} : vector<8x8xf32>, vector<8x8xf32>, vector<8x8xf32> -> vector<8x8xf32>
    %cst_27 = arith.constant dense<0xFF800000> : vector<8xf32>
    %34 = vector.multi_reduction <maximumf>, %33, %cst_27 [1] : vector<8x8xf32> to vector<8xf32>
    %35 = vector.shape_cast %34 : vector<8xf32> to vector<8x1xf32>
    %36 = vector.broadcast %35 : vector<8x1xf32> to vector<8x8xf32>
    %37 = arith.subf %33, %36 : vector<8x8xf32>
    %38 = math.exp %37 : vector<8x8xf32>
    %cst_28 = arith.constant dense<0.000000e+00> : vector<8xf32>
    %39 = vector.multi_reduction <add>, %38, %cst_28 [1] : vector<8x8xf32> to vector<8xf32>
    %40 = vector.shape_cast %39 : vector<8xf32> to vector<8x1xf32>
    %41 = vector.broadcast %40 : vector<8x1xf32> to vector<8x8xf32>
    %42 = arith.divf %38, %41 : vector<8x8xf32>
    %c0_29 = arith.constant 0 : index
    %c1 = arith.constant 1 : index
    %c0_30 = arith.constant 0 : index
    %c0_31 = arith.constant 0 : index
    %43 = vector.load %arg10[%c0_29, %c1, %c0_30, %c0_31] : memref<1x4x8x8xf32, #tpu.memory_space<vmem>>, vector<1x1x8x8xf32>
    %44 = vector.shape_cast %43 : vector<1x1x8x8xf32> to vector<8x8xf32>
    %45 = vector.shape_cast %42 : vector<8x8xf32> to vector<1x1x8x8xf32>
    tpu.vector_store %arg10[%c0_29, %c1, %c0_30, %c0_31], %45 {strides = array<i32>} : memref<1x4x8x8xf32, #tpu.memory_space<vmem>>, vector<1x1x8x8xf32>,
    %cst_32 = arith.constant dense<0.000000e+00> : vector<8x8xf32>
    %46 = tpu.matmul %42, %32, %cst_32 {dimension_numbers = #tpu.dot_dimension_numbers<[1], [0], [0], [1], [0, 0, 1, 1], [], []>} : vector<8x8xf32>, vector<8x8xf32>, vector<8x8xf32> -> vector<8x8xf32>
    %c0_33 = arith.constant 0 : index
    %c8 = arith.constant 8 : index
    %47 = vector.load %arg11[%c0_33, %c8] : memref<8x32xf32, #tpu.memory_space<vmem>>, vector<8x8xf32>
    tpu.vector_store %arg11[%c0_33, %c8], %46 {strides = array<i32>} : memref<8x32xf32, #tpu.memory_space<vmem>>, vector<8x8xf32>,
    %48 = vector.extract_strided_slice %7 {offsets = [0, 16], sizes = [8, 8], strides = [1, 1]} : vector<8x32xf32> to vector<8x8xf32>
    %49 = vector.extract_strided_slice %9 {offsets = [0, 16], sizes = [8, 8], strides = [1, 1]} : vector<8x32xf32> to vector<8x8xf32>
    %50 = vector.extract_strided_slice %11 {offsets = [0, 16], sizes = [8, 8], strides = [1, 1]} : vector<8x32xf32> to vector<8x8xf32>
    %cst_34 = arith.constant dense<0.000000e+00> : vector<8x8xf32>
    %51 = tpu.matmul %48, %49, %cst_34 {dimension_numbers = #tpu.dot_dimension_numbers<[1], [1], [0], [0], [0, 0, 1, 0], [], []>} : vector<8x8xf32>, vector<8x8xf32>, vector<8x8xf32> -> vector<8x8xf32>
    %cst_35 = arith.constant dense<0xFF800000> : vector<8xf32>
    %52 = vector.multi_reduction <maximumf>, %51, %cst_35 [1] : vector<8x8xf32> to vector<8xf32>
    %53 = vector.shape_cast %52 : vector<8xf32> to vector<8x1xf32>
    %54 = vector.broadcast %53 : vector<8x1xf32> to vector<8x8xf32>
    %55 = arith.subf %51, %54 : vector<8x8xf32>
    %56 = math.exp %55 : vector<8x8xf32>
    %cst_36 = arith.constant dense<0.000000e+00> : vector<8xf32>
    %57 = vector.multi_reduction <add>, %56, %cst_36 [1] : vector<8x8xf32> to vector<8xf32>
    %58 = vector.shape_cast %57 : vector<8xf32> to vector<8x1xf32>
    %59 = vector.broadcast %58 : vector<8x1xf32> to vector<8x8xf32>
    %60 = arith.divf %56, %59 : vector<8x8xf32>
    %c0_37 = arith.constant 0 : index
    %c2 = arith.constant 2 : index
    %c0_38 = arith.constant 0 : index
    %c0_39 = arith.constant 0 : index
    %61 = vector.load %arg10[%c0_37, %c2, %c0_38, %c0_39] : memref<1x4x8x8xf32, #tpu.memory_space<vmem>>, vector<1x1x8x8xf32>
    %62 = vector.shape_cast %61 : vector<1x1x8x8xf32> to vector<8x8xf32>
    %63 = vector.shape_cast %60 : vector<8x8xf32> to vector<1x1x8x8xf32>
    tpu.vector_store %arg10[%c0_37, %c2, %c0_38, %c0_39], %63 {strides = array<i32>} : memref<1x4x8x8xf32, #tpu.memory_space<vmem>>, vector<1x1x8x8xf32>,
    %cst_40 = arith.constant dense<0.000000e+00> : vector<8x8xf32>
    %64 = tpu.matmul %60, %50, %cst_40 {dimension_numbers = #tpu.dot_dimension_numbers<[1], [0], [0], [1], [0, 0, 1, 1], [], []>} : vector<8x8xf32>, vector<8x8xf32>, vector<8x8xf32> -> vector<8x8xf32>
    %c0_41 = arith.constant 0 : index
    %c16 = arith.constant 16 : index
    %65 = vector.load %arg11[%c0_41, %c16] : memref<8x32xf32, #tpu.memory_space<vmem>>, vector<8x8xf32>
    tpu.vector_store %arg11[%c0_41, %c16], %64 {strides = array<i32>} : memref<8x32xf32, #tpu.memory_space<vmem>>, vector<8x8xf32>,
    %66 = vector.extract_strided_slice %7 {offsets = [0, 24], sizes = [8, 8], strides = [1, 1]} : vector<8x32xf32> to vector<8x8xf32>
    %67 = vector.extract_strided_slice %9 {offsets = [0, 24], sizes = [8, 8], strides = [1, 1]} : vector<8x32xf32> to vector<8x8xf32>
    %68 = vector.extract_strided_slice %11 {offsets = [0, 24], sizes = [8, 8], strides = [1, 1]} : vector<8x32xf32> to vector<8x8xf32>
    %cst_42 = arith.constant dense<0.000000e+00> : vector<8x8xf32>
    %69 = tpu.matmul %66, %67, %cst_42 {dimension_numbers = #tpu.dot_dimension_numbers<[1], [1], [0], [0], [0, 0, 1, 0], [], []>} : vector<8x8xf32>, vector<8x8xf32>, vector<8x8xf32> -> vector<8x8xf32>
    %cst_43 = arith.constant dense<0xFF800000> : vector<8xf32>
    %70 = vector.multi_reduction <maximumf>, %69, %cst_43 [1] : vector<8x8xf32> to vector<8xf32>
    %71 = vector.shape_cast %70 : vector<8xf32> to vector<8x1xf32>
    %72 = vector.broadcast %71 : vector<8x1xf32> to vector<8x8xf32>
    %73 = arith.subf %69, %72 : vector<8x8xf32>
    %74 = math.exp %73 : vector<8x8xf32>
    %cst_44 = arith.constant dense<0.000000e+00> : vector<8xf32>
    %75 = vector.multi_reduction <add>, %74, %cst_44 [1] : vector<8x8xf32> to vector<8xf32>
    %76 = vector.shape_cast %75 : vector<8xf32> to vector<8x1xf32>
    %77 = vector.broadcast %76 : vector<8x1xf32> to vector<8x8xf32>
    %78 = arith.divf %74, %77 : vector<8x8xf32>
    %c0_45 = arith.constant 0 : index
    %c3 = arith.constant 3 : index
    %c0_46 = arith.constant 0 : index
    %c0_47 = arith.constant 0 : index
    %79 = vector.load %arg10[%c0_45, %c3, %c0_46, %c0_47] : memref<1x4x8x8xf32, #tpu.memory_space<vmem>>, vector<1x1x8x8xf32>
    %80 = vector.shape_cast %79 : vector<1x1x8x8xf32> to vector<8x8xf32>
    %81 = vector.shape_cast %78 : vector<8x8xf32> to vector<1x1x8x8xf32>
    tpu.vector_store %arg10[%c0_45, %c3, %c0_46, %c0_47], %81 {strides = array<i32>} : memref<1x4x8x8xf32, #tpu.memory_space<vmem>>, vector<1x1x8x8xf32>,
    %cst_48 = arith.constant dense<0.000000e+00> : vector<8x8xf32>
    %82 = tpu.matmul %78, %68, %cst_48 {dimension_numbers = #tpu.dot_dimension_numbers<[1], [0], [0], [1], [0, 0, 1, 1], [], []>} : vector<8x8xf32>, vector<8x8xf32>, vector<8x8xf32> -> vector<8x8xf32>
    %c0_49 = arith.constant 0 : index
    %c24 = arith.constant 24 : index
    %83 = vector.load %arg11[%c0_49, %c24] : memref<8x32xf32, #tpu.memory_space<vmem>>, vector<8x8xf32>
    tpu.vector_store %arg11[%c0_49, %c24], %82 {strides = array<i32>} : memref<8x32xf32, #tpu.memory_space<vmem>>, vector<8x8xf32>,
    %c0_50 = arith.constant 0 : index
    %c0_51 = arith.constant 0 : index
    %84 = vector.load %arg11[%c0_50, %c0_51] : memref<8x32xf32, #tpu.memory_space<vmem>>, vector<8x32xf32>
    %c0_52 = arith.constant 0 : index
    %c0_53 = arith.constant 0 : index
    %85 = vector.load %arg7[%c0_52, %c0_53] : memref<32x32xf32, #tpu.memory_space<vmem>>, vector<32x32xf32>
    %cst_54 = arith.constant dense<0.000000e+00> : vector<8x32xf32>
    %86 = tpu.matmul %84, %85, %cst_54 {dimension_numbers = #tpu.dot_dimension_numbers<[1], [0], [0], [1], [0, 0, 1, 1], [], []>} : vector<8x32xf32>, vector<32x32xf32>, vector<8x32xf32> -> vector<8x32xf32>
    %c0_55 = arith.constant 0 : index
    %c0_56 = arith.constant 0 : index
    %87 = vector.load %arg8[%c0_55, %c0_56] : memref<1x32xf32, #tpu.memory_space<vmem>>, vector<1x32xf32>
    %88 = vector.broadcast %87 : vector<1x32xf32> to vector<8x32xf32>
    %89 = arith.addf %86, %88 : vector<8x32xf32>
    %c0_57 = arith.constant 0 : index
    %c0_58 = arith.constant 0 : index
    %c0_59 = arith.constant 0 : index
    %90 = vector.load %arg9[%c0_57, %c0_58, %c0_59] : memref<1x8x32xf32, #tpu.memory_space<vmem>>, vector<1x8x32xf32>
    %91 = vector.shape_cast %90 : vector<1x8x32xf32> to vector<8x32xf32>
    %92 = vector.shape_cast %89 : vector<8x32xf32> to vector<1x8x32xf32>
    tpu.vector_store %arg9[%c0_57, %c0_58, %c0_59], %92 {strides = array<i32>} : memref<1x8x32xf32, #tpu.memory_space<vmem>>, vector<1x8x32xf32>,
    return
  }
  func.func @transform_0(%arg0: i32) -> (i32, i32, i32) {
    %c0_i32 = arith.constant 0 : i32
    %c0_i32_0 = arith.constant 0 : i32
    %c0_i32_1 = arith.constant 0 : i32
    return %arg0, %c0_i32, %c0_i32_0 : i32, i32, i32
  }
  func.func @transform_1(%arg0: i32) -> (i32, i32, i32) {
    %c0_i32 = arith.constant 0 : i32
    %c0_i32_0 = arith.constant 0 : i32
    %c0_i32_1 = arith.constant 0 : i32
    return %arg0, %c0_i32, %c0_i32_0 : i32, i32, i32
  }
  func.func @transform_2(%arg0: i32) -> (i32, i32, i32) {
    %c0_i32 = arith.constant 0 : i32
    %c0_i32_0 = arith.constant 0 : i32
    %c0_i32_1 = arith.constant 0 : i32
    return %arg0, %c0_i32, %c0_i32_0 : i32, i32, i32
  }
  func.func @transform_3(%arg0: i32) -> (i32, i32) {
    %c0_i32 = arith.constant 0 : i32
    %c0_i32_0 = arith.constant 0 : i32
    %c0_i32_1 = arith.constant 0 : i32
    return %c0_i32, %c0_i32_0 : i32, i32
  }
  func.func @transform_4(%arg0: i32) -> (i32, i32) {
    %c0_i32 = arith.constant 0 : i32
    %c0_i32_0 = arith.constant 0 : i32
    %c0_i32_1 = arith.constant 0 : i32
    return %c0_i32, %c0_i32_0 : i32, i32
  }
  func.func @transform_5(%arg0: i32) -> (i32, i32) {
    %c0_i32 = arith.constant 0 : i32
    %c0_i32_0 = arith.constant 0 : i32
    %c0_i32_1 = arith.constant 0 : i32
    return %c0_i32, %c0_i32_0 : i32, i32
  }
  func.func @transform_6(%arg0: i32) -> (i32, i32) {
    %c0_i32 = arith.constant 0 : i32
    %c0_i32_0 = arith.constant 0 : i32
    %c0_i32_1 = arith.constant 0 : i32
    return %c0_i32, %c0_i32_0 : i32, i32
  }
  func.func @transform_7(%arg0: i32) -> (i32, i32) {
    %c0_i32 = arith.constant 0 : i32
    %c0_i32_0 = arith.constant 0 : i32
    %c0_i32_1 = arith.constant 0 : i32
    return %c0_i32, %c0_i32_0 : i32, i32
  }
  func.func @transform_8(%arg0: i32) -> (i32, i32, i32) {
    %c0_i32 = arith.constant 0 : i32
    %c0_i32_0 = arith.constant 0 : i32
    %c0_i32_1 = arith.constant 0 : i32
    return %arg0, %c0_i32, %c0_i32_0 : i32, i32, i32
  }
  func.func @transform_9(%arg0: i32) -> (i32, i32, i32, i32) {
    %c0_i32 = arith.constant 0 : i32
    %c0_i32_0 = arith.constant 0 : i32
    %c0_i32_1 = arith.constant 0 : i32
    %c0_i32_2 = arith.constant 0 : i32
    return %arg0, %c0_i32, %c0_i32_0, %c0_i32_1 : i32, i32, i32, i32
  }
}

</mosaic_0001>

<llo_original>
// kernel: tpu_custom_call.1
$region0: #{tpu_custom_call.1}
  #allocation0 [shape = 'u32[]', space=smem, size = 0x4, offset = 0x4, fixed_abs, tag = 'smem constant byte address 0x4 - core index']
  #allocation1 [shape = 'u32[72,128]{1,0:T(1,128)}', space=vmem, size = 0x9000, scoped, tag = 'internal scratch']
  #allocation2 [shape = 'f32[8,32]{1,0:T(8,128)}', space=vmem, size = 0x1000, scoped, tag = 'scratch operand']
  %s0 = inlined_call_operand.hbm [shape: f32[2,8,32], index: 0, kind: input, shape index: {}]
  %s1 = inlined_call_operand.hbm [shape: f32[2,8,32], index: 1, kind: input, shape index: {}]
  %s2 = inlined_call_operand.hbm [shape: f32[2,8,32], index: 2, kind: input, shape index: {}]
  %s3 = inlined_call_operand.hbm [shape: f32[32,32], index: 3, kind: input, shape index: {}]
  %s4 = inlined_call_operand.hbm [shape: f32[32,32], index: 4, kind: input, shape index: {}]
  %s5 = inlined_call_operand.hbm [shape: f32[32,32], index: 5, kind: input, shape index: {}]
  %s6 = inlined_call_operand.hbm [shape: f32[32,32], index: 6, kind: input, shape index: {}]
  %s7 = inlined_call_operand.vmem [shape: f32[1,32], index: 7, kind: input, shape index: {}]
  %s8 = inlined_call_operand.hbm [shape: f32[2,8,32], index: 8, kind: output, shape index: {0}]
  %s9 = inlined_call_operand.hbm [shape: f32[2,4,8,8], index: 9, kind: output, shape index: {1}]
  %10 = xla_tuple %s8, %s9
  %s11 = sld [smem:[#allocation0]]
  $region101: #{tpu_custom_call.1} parent=0
    _
  %s13 = ssub.s32 1, %s11
  %s14 = scalar_select 0, %s13, %s11
  $region1: #{tpu_custom_call.1} parent=0
    #allocation3 [shape = 'u8[8192]{0}', space=vmem, size = 0x2000, scoped, tag = 'input window, operand 0']
    #allocation4 [shape = 's32[2]{0}', space=sflag, size = 0x8, scoped, tag = 'scoped memory for tpu_custom_call.1']
    #allocation5 [shape = 's32[2]{0}', space=sflag, size = 0x8, scoped, tag = 'scoped memory for tpu_custom_call.1']
    #allocation6 [shape = 'u8[8192]{0}', space=vmem, size = 0x2000, scoped, tag = 'input window, operand 1']
    #allocation7 [shape = 's32[2]{0}', space=sflag, size = 0x8, scoped, tag = 'scoped memory for tpu_custom_call.1']
    #allocation8 [shape = 'u8[8192]{0}', space=vmem, size = 0x2000, scoped, tag = 'input window, operand 2']
    #allocation9 [shape = 'u8[16384]{0}', space=vmem, size = 0x4000, scoped, tag = 'input window, operand 3, single buffered']
    #allocation10 [shape = 's32[1]{0}', space=sflag, size = 0x4, scoped, tag = 'scoped memory for tpu_custom_call.1']
    #allocation11 [shape = 'u8[16384]{0}', space=vmem, size = 0x4000, scoped, tag = 'input window, operand 4, single buffered']
    #allocation12 [shape = 'u8[16384]{0}', space=vmem, size = 0x4000, scoped, tag = 'input window, operand 5, single buffered']
    #allocation13 [shape = 's32[1]{0}', space=sflag, size = 0x4, scoped, tag = 'scoped memory for tpu_custom_call.1']
    #allocation14 [shape = 'u8[16384]{0}', space=vmem, size = 0x4000, scoped, tag = 'input window, operand 6, single buffered']
    #allocation15 [shape = 'u8[8192]{0}', space=vmem, size = 0x2000, scoped, tag = 'output window, operand 0']
    #allocation16 [shape = 'u8[32768]{0}', space=vmem, size = 0x8000, scoped, tag = 'output window, operand 1']
    #allocation17 [shape = 's32[2]{0}', space=sflag, size = 0x8, scoped, tag = 'scoped memory for tpu_custom_call.1']
    %15 = vsyncpa [#allocation4], 0
    %s16 = scalar_lea.sflag [#allocation4], 1
    %17 = vsyncpa %s16, 0
    %18 = vsyncpa [#allocation7], 0
    %s19 = scalar_lea.sflag [#allocation7], 1
    %20 = vsyncpa %s19, 0
    %21 = vsyncpa [#allocation10], 0
    %22 = vsyncpa [#allocation13], 0
    %23 = vsyncpa [#allocation5], 0
    %s24 = scalar_lea.sflag [#allocation5], 1
    %25 = vsyncpa %s24, 0
    %26 = vsyncpa [#allocation17], 0
    %s27 = scalar_lea.sflag [#allocation17], 1
    %28 = vsyncpa %s27, 0
    loop: start=0, step=1, limit=4
    $region2: #{tpu_custom_call.1} parent=1 // loop_pre_header
      _
    $region3: #{tpu_custom_call.1} parent=1 // loop_header
      %s30 = sphi 0, %s34
      %p31 = scmp.ge.s32.totalorder %s30, 4
      %s40 = sphi 0, %s42
      %s43 = sphi 0, %s40
      %s44 = sphi 0, %s43
      %s60 = sphi 0, %s44
      %s66 = sphi 0, %s68
      %s69 = sphi 0, %s66
      %s70 = sphi 0, %s69
      %s86 = sphi 0, %s70
      %s92 = sphi 0, %s94
      %s95 = sphi 0, %s92
      %s96 = sphi 0, %s95
      %s112 = sphi 0, %s96
      %s116 = sphi 0, %s116
      %s118 = sphi 0, %s116
      %s119 = sphi 0, %s118
      %s133 = sphi 0, %s119
      %s137 = sphi 0, %s137
      %s139 = sphi 0, %s137
      %s140 = sphi 0, %s139
      %s154 = sphi 0, %s140
      %s158 = sphi 0, %s158
      %s160 = sphi 0, %s158
      %s161 = sphi 0, %s160
      %s175 = sphi 0, %s161
      %s179 = sphi 0, %s179
      %s181 = sphi 0, %s179
      %s182 = sphi 0, %s181
      %s196 = sphi 0, %s182
      %s200 = sphi 0, %s200
      %s202 = sphi 0, %s200
      %s203 = sphi 0, %s202
      %s217 = sphi 0, %s203
      %s223 = sphi 0, %s225
      %s226 = sphi 0, %s223
      %s227 = sphi 0, %s226
      %s243 = sphi 0, %s227
      %s249 = sphi 0, %s251
      %s252 = sphi 0, %s249
      %s253 = sphi 0, %s252
      %s269 = sphi 0, %s253
    $region4: #{tpu_custom_call.1} parent=1 // loop_header_branch
      %33 = sbr.rel (%p31) target = $region8
    $region5: #{tpu_custom_call.1} parent=1 // loop_body
      %s35 = ssub.s32 %s30, 1
      %s36 = ssub.s32 %s30, 2
      %s37 = sadd.s32 %s30, 1
      %s38 = ssub.s32 %s30, %s37
      %p39 = scmp.eq.s32.totalorder %s38, 0
      %s41 = sadd.s32 %s40, 1
      %s42 = scalar_select %p39, %s40, %s41
      %p45 = pneg %p39
      %p46 = scmp.eq.s32.totalorder %s30, 1
      %p47 = por %p45, %p46
      %p48 = scmp.ne.s32.totalorder %s40, %s43
      %p49 = scmp.eq.s32.totalorder %s30, 0
      %p50 = por %p48, %p49
      %p51 = scmp.ne.s32.totalorder %s40, %s43
      %p52 = scmp.eq.s32.totalorder %s35, 1
      %p53 = por %p51, %p52
      %p54 = scmp.ne.s32.totalorder %s43, %s44
      %p55 = scmp.eq.s32.totalorder %s35, 0
      %p56 = por %p54, %p55
      %p57 = scmp.ne.s32.totalorder %s43, %s44
      %p58 = scmp.eq.s32.totalorder %s36, 1
      %p59 = por %p57, %p58
      %p61 = scmp.ne.s32.totalorder %s44, %s60
      %p62 = scmp.eq.s32.totalorder %s36, 0
      %p63 = por %p61, %p62
      %s64 = ssub.s32 %s30, %s37
      %p65 = scmp.eq.s32.totalorder %s64, 0
      %s67 = sadd.s32 %s66, 1
      %s68 = scalar_select %p65, %s66, %s67
      %p71 = pneg %p65
      %p72 = scmp.eq.s32.totalorder %s30, 1
      %p73 = por %p71, %p72
      %p74 = scmp.ne.s32.totalorder %s66, %s69
      %p75 = scmp.eq.s32.totalorder %s30, 0
      %p76 = por %p74, %p75
      %p77 = scmp.ne.s32.totalorder %s66, %s69
      %p78 = scmp.eq.s32.totalorder %s35, 1
      %p79 = por %p77, %p78
      %p80 = scmp.ne.s32.totalorder %s69, %s70
      %p81 = scmp.eq.s32.totalorder %s35, 0
      %p82 = por %p80, %p81
      %p83 = scmp.ne.s32.totalorder %s69, %s70
      %p84 = scmp.eq.s32.totalorder %s36, 1
      %p85 = por %p83, %p84
      %p87 = scmp.ne.s32.totalorder %s70, %s86
      %p88 = scmp.eq.s32.totalorder %s36, 0
      %p89 = por %p87, %p88
      %s90 = ssub.s32 %s30, %s37
      %p91 = scmp.eq.s32.totalorder %s90, 0
      %s93 = sadd.s32 %s92, 1
      %s94 = scalar_select %p91, %s92, %s93
      %p97 = pneg %p91
      %p98 = scmp.eq.s32.totalorder %s30, 1
      %p99 = por %p97, %p98
      %p100 = scmp.ne.s32.totalorder %s92, %s95
      %p101 = scmp.eq.s32.totalorder %s30, 0
      %p102 = por %p100, %p101
      %p103 = scmp.ne.s32.totalorder %s92, %s95
      %p104 = scmp.eq.s32.totalorder %s35, 1
      %p105 = por %p103, %p104
      %p106 = scmp.ne.s32.totalorder %s95, %s96
      %p107 = scmp.eq.s32.totalorder %s35, 0
      %p108 = por %p106, %p107
      %p109 = scmp.ne.s32.totalorder %s95, %s96
      %p110 = scmp.eq.s32.totalorder %s36, 1
      %p111 = por %p109, %p110
      %p113 = scmp.ne.s32.totalorder %s96, %s112
      %p114 = scmp.eq.s32.totalorder %s36, 0
      %p115 = por %p113, %p114
      %s117 = sadd.s32 %s116, 1
      %p120 = scmp.eq.s32.totalorder %s30, 1
      %p121 = scmp.ne.s32.totalorder %s116, %s118
      %p122 = scmp.eq.s32.totalorder %s30, 0
      %p123 = por %p121, %p122
      %p124 = scmp.ne.s32.totalorder %s116, %s118
      %p125 = scmp.eq.s32.totalorder %s35, 1
      %p126 = por %p124, %p125
      %p127 = scmp.ne.s32.totalorder %s118, %s119
      %p128 = scmp.eq.s32.totalorder %s35, 0
      %p129 = por %p127, %p128
      %p130 = scmp.ne.s32.totalorder %s118, %s119
      %p131 = scmp.eq.s32.totalorder %s36, 1
      %p132 = por %p130, %p131
      %p134 = scmp.ne.s32.totalorder %s119, %s133
      %p135 = scmp.eq.s32.totalorder %s36, 0
      %p136 = por %p134, %p135
      %s138 = sadd.s32 %s137, 1
      %p141 = scmp.eq.s32.totalorder %s30, 1
      %p142 = scmp.ne.s32.totalorder %s137, %s139
      %p143 = scmp.eq.s32.totalorder %s30, 0
      %p144 = por %p142, %p143
      %p145 = scmp.ne.s32.totalorder %s137, %s139
      %p146 = scmp.eq.s32.totalorder %s35, 1
      %p147 = por %p145, %p146
      %p148 = scmp.ne.s32.totalorder %s139, %s140
      %p149 = scmp.eq.s32.totalorder %s35, 0
      %p150 = por %p148, %p149
      %p151 = scmp.ne.s32.totalorder %s139, %s140
      %p152 = scmp.eq.s32.totalorder %s36, 1
      %p153 = por %p151, %p152
      %p155 = scmp.ne.s32.totalorder %s140, %s154
      %p156 = scmp.eq.s32.totalorder %s36, 0
      %p157 = por %p155, %p156
      %s159 = sadd.s32 %s158, 1
      %p162 = scmp.eq.s32.totalorder %s30, 1
      %p163 = scmp.ne.s32.totalorder %s158, %s160
      %p164 = scmp.eq.s32.totalorder %s30, 0
      %p165 = por %p163, %p164
      %p166 = scmp.ne.s32.totalorder %s158, %s160
      %p167 = scmp.eq.s32.totalorder %s35, 1
      %p168 = por %p166, %p167
      %p169 = scmp.ne.s32.totalorder %s160, %s161
      %p170 = scmp.eq.s32.totalorder %s35, 0
      %p171 = por %p169, %p170
      %p172 = scmp.ne.s32.totalorder %s160, %s161
      %p173 = scmp.eq.s32.totalorder %s36, 1
      %p174 = por %p172, %p173
      %p176 = scmp.ne.s32.totalorder %s161, %s175
      %p177 = scmp.eq.s32.totalorder %s36, 0
      %p178 = por %p176, %p177
      %s180 = sadd.s32 %s179, 1
      %p183 = scmp.eq.s32.totalorder %s30, 1
      %p184 = scmp.ne.s32.totalorder %s179, %s181
      %p185 = scmp.eq.s32.totalorder %s30, 0
      %p186 = por %p184, %p185
      %p187 = scmp.ne.s32.totalorder %s179, %s181
      %p188 = scmp.eq.s32.totalorder %s35, 1
      %p189 = por %p187, %p188
      %p190 = scmp.ne.s32.totalorder %s181, %s182
      %p191 = scmp.eq.s32.totalorder %s35, 0
      %p192 = por %p190, %p191
      %p193 = scmp.ne.s32.totalorder %s181, %s182
      %p194 = scmp.eq.s32.totalorder %s36, 1
      %p195 = por %p193, %p194
      %p197 = scmp.ne.s32.totalorder %s182, %s196
      %p198 = scmp.eq.s32.totalorder %s36, 0
      %p199 = por %p197, %p198
      %s201 = sadd.s32 %s200, 1
      %p204 = scmp.eq.s32.totalorder %s30, 1
      %p205 = scmp.ne.s32.totalorder %s200, %s202
      %p206 = scmp.eq.s32.totalorder %s30, 0
      %p207 = por %p205, %p206
      %p208 = scmp.ne.s32.totalorder %s200, %s202
      %p209 = scmp.eq.s32.totalorder %s35, 1
      %p210 = por %p208, %p209
      %p211 = scmp.ne.s32.totalorder %s202, %s203
      %p212 = scmp.eq.s32.totalorder %s35, 0
      %p213 = por %p211, %p212
      %p214 = scmp.ne.s32.totalorder %s202, %s203
      %p215 = scmp.eq.s32.totalorder %s36, 1
      %p216 = por %p214, %p215
      %p218 = scmp.ne.s32.totalorder %s203, %s217
      %p219 = scmp.eq.s32.totalorder %s36, 0
      %p220 = por %p218, %p219
      %s221 = ssub.s32 %s30, %s37
      %p222 = scmp.eq.s32.totalorder %s221, 0
      %s224 = sadd.s32 %s223, 1
      %s225 = scalar_select %p222, %s223, %s224
      %p228 = pneg %p222
      %p229 = scmp.eq.s32.totalorder %s30, 1
      %p230 = por %p228, %p229
      %p231 = scmp.ne.s32.totalorder %s223, %s226
      %p232 = scmp.eq.s32.totalorder %s30, 0
      %p233 = por %p231, %p232
      %p234 = scmp.ne.s32.totalorder %s223, %s226
      %p235 = scmp.eq.s32.totalorder %s35, 1
      %p236 = por %p234, %p235
      %p237 = scmp.ne.s32.totalorder %s226, %s227
      %p238 = scmp.eq.s32.totalorder %s35, 0
      %p239 = por %p237, %p238
      %p240 = scmp.ne.s32.totalorder %s226, %s227
      %p241 = scmp.eq.s32.totalorder %s36, 1
      %p242 = por %p240, %p241
      %p244 = scmp.ne.s32.totalorder %s227, %s243
      %p245 = scmp.eq.s32.totalorder %s36, 0
      %p246 = por %p244, %p245
      %s247 = ssub.s32 %s30, %s37
      %p248 = scmp.eq.s32.totalorder %s247, 0
      %s250 = sadd.s32 %s249, 1
      %s251 = scalar_select %p248, %s249, %s250
      %p254 = pneg %p248
      %p255 = scmp.eq.s32.totalorder %s30, 1
      %p256 = por %p254, %p255
      %p257 = scmp.ne.s32.totalorder %s249, %s252
      %p258 = scmp.eq.s32.totalorder %s30, 0
      %p259 = por %p257, %p258
      %p260 = scmp.ne.s32.totalorder %s249, %s252
      %p261 = scmp.eq.s32.totalorder %s35, 1
      %p262 = por %p260, %p261
      %p263 = scmp.ne.s32.totalorder %s252, %s253
      %p264 = scmp.eq.s32.totalorder %s35, 0
      %p265 = por %p263, %p264
      %p266 = scmp.ne.s32.totalorder %s252, %s253
      %p267 = scmp.eq.s32.totalorder %s36, 1
      %p268 = por %p266, %p267
      %p270 = scmp.ne.s32.totalorder %s253, %s269
      %p271 = scmp.eq.s32.totalorder %s36, 0
      %p272 = por %p270, %p271
      %p273 = scmp.le.s32.totalorder 1, %s30
      %p274 = scmp.lt.s32.totalorder %s30, 3
      %p275 = pnand %p273, %p274
      %p276 = pneg %p275
      // Predicated region
      $region9: #{tpu_custom_call.1} parent=5 // pred_check
        _
      $region10: #{tpu_custom_call.1} parent=5 // pred_check_branch
        %278 = sbr.rel (%p275) target = $region12
      $region11: #{tpu_custom_call.1} parent=5 // pred_region
        %s279 = ssub.s32 %s30, 1
        // Predicated region
        $region13: #{tpu_custom_call.1} parent=11 // pred_check
          %p280 = pneg %p129
        $region14: #{tpu_custom_call.1} parent=11 // pred_check_branch
          %282 = sbr.rel (%p280) target = $region16
        $region15: #{tpu_custom_call.1} parent=11 // pred_region
          %284 = vsyncadd [#allocation10], 0
          %s285 = sshll.u32 %s3, 4
          %s286 = int_to_ptr.hbm [resolvable:$true] %s285
          %s287 = sshll.u32 [#allocation9], 4
          %s288 = int_to_ptr.vmem [resolvable:$true] %s287
          %293 = dma.hbm_to_vmem [thread:$0]  %s286, 512, %s288, [#allocation10], 128, 128, 8
        $region16: #{tpu_custom_call.1} parent=11 // pred_fallthru
          _
        // Predicated region
        $region17: #{tpu_custom_call.1} parent=11 // pred_check
          %p294 = pneg %p150
        $region18: #{tpu_custom_call.1} parent=11 // pred_check_branch
          %296 = sbr.rel (%p294) target = $region20
        $region19: #{tpu_custom_call.1} parent=11 // pred_region
          %298 = vsyncadd [#allocation10], 0
          %s299 = sshll.u32 %s4, 4
          %s300 = int_to_ptr.hbm [resolvable:$true] %s299
          %s301 = sshll.u32 [#allocation11], 4
          %s302 = int_to_ptr.vmem [resolvable:$true] %s301
          %307 = dma.hbm_to_vmem [thread:$0]  %s300, 512, %s302, [#allocation10], 128, 128, 8
        $region20: #{tpu_custom_call.1} parent=11 // pred_fallthru
          _
        // Predicated region
        $region21: #{tpu_custom_call.1} parent=11 // pred_check
          %p308 = pneg %p171
        $region22: #{tpu_custom_call.1} parent=11 // pred_check_branch
          %310 = sbr.rel (%p308) target = $region24
        $region23: #{tpu_custom_call.1} parent=11 // pred_region
          %312 = vsyncadd [#allocation13], 0
          %s313 = sshll.u32 %s5, 4
          %s314 = int_to_ptr.hbm [resolvable:$true] %s313
          %s315 = sshll.u32 [#allocation12], 4
          %s316 = int_to_ptr.vmem [resolvable:$true] %s315
          %321 = dma.hbm_to_vmem [thread:$0]  %s314, 512, %s316, [#allocation13], 128, 128, 8
        $region24: #{tpu_custom_call.1} parent=11 // pred_fallthru
          _
        // Predicated region
        $region25: #{tpu_custom_call.1} parent=11 // pred_check
          %p322 = pneg %p192
        $region26: #{tpu_custom_call.1} parent=11 // pred_check_branch
          %324 = sbr.rel (%p322) target = $region28
        $region27: #{tpu_custom_call.1} parent=11 // pred_region
          %326 = vsyncadd [#allocation13], 0
          %s327 = sshll.u32 %s6, 4
          %s328 = int_to_ptr.hbm [resolvable:$true] %s327
          %s329 = sshll.u32 [#allocation14], 4
          %s330 = int_to_ptr.vmem [resolvable:$true] %s329
          %335 = dma.hbm_to_vmem [thread:$0]  %s328, 512, %s330, [#allocation13], 128, 128, 8
        $region28: #{tpu_custom_call.1} parent=11 // pred_fallthru
          _
        // Predicated region
        $region29: #{tpu_custom_call.1} parent=11 // pred_check
          %p336 = pneg %p213
        $region30: #{tpu_custom_call.1} parent=11 // pred_check_branch
          %338 = sbr.rel (%p336) target = $region32
        $region31: #{tpu_custom_call.1} parent=11 // pred_region
          _
        $region32: #{tpu_custom_call.1} parent=11 // pred_fallthru
          _
      $region12: #{tpu_custom_call.1} parent=5 // pred_fallthru
        _
      %p339 = scmp.lt.s32.totalorder %s30, 2
      // Predicated region
      $region33: #{tpu_custom_call.1} parent=5 // pred_check
        %p340 = pneg %p339
      $region34: #{tpu_custom_call.1} parent=5 // pred_check_branch
        %342 = sbr.rel (%p340) target = $region36
      $region35: #{tpu_custom_call.1} parent=5 // pred_region
        // Predicated region
        $region37: #{tpu_custom_call.1} parent=35 // pred_check
          %p343 = pneg %p50
        $region38: #{tpu_custom_call.1} parent=35 // pred_check_branch
          %345 = sbr.rel (%p343) target = $region40
        $region39: #{tpu_custom_call.1} parent=35 // pred_region
          %s346 = sand.u32 %s40, 1
          %s347 = scalar_lea.sflag [#allocation4], %s346
          %s348 = sand.u32 %s40, 1
          %s349 = smul.addr %s348, 8
          %s350 = scalar_lea.vmem [#allocation3], %s349
          %352 = vsyncadd %s347, 0
          %s353 = smul.addr %s30, 8
          %s354 = scalar_lea.hbm %s0, %s353
          %s356 = sshll.u32 %s354, 4
          %s357 = int_to_ptr.hbm [resolvable:$true] %s356
          %s358 = sshll.u32 %s350, 4
          %s359 = int_to_ptr.vmem [resolvable:$true] %s358
          %361 = dma.hbm_to_vmem [thread:$0]  %s357, 128, %s359, %s347
        $region40: #{tpu_custom_call.1} parent=35 // pred_fallthru
          _
        // Predicated region
        $region41: #{tpu_custom_call.1} parent=35 // pred_check
          %p362 = pneg %p76
        $region42: #{tpu_custom_call.1} parent=35 // pred_check_branch
          %364 = sbr.rel (%p362) target = $region44
        $region43: #{tpu_custom_call.1} parent=35 // pred_region
          %s365 = sand.u32 %s30, 1
          %s366 = scalar_lea.sflag [#allocation7], %s365
          %s367 = sand.u32 %s66, 1
          %s368 = smul.addr %s367, 8
          %s369 = scalar_lea.vmem [#allocation6], %s368
          %371 = vsyncadd %s366, 0
          %s372 = smul.addr %s30, 8
          %s373 = scalar_lea.hbm %s1, %s372
          %s375 = sshll.u32 %s373, 4
          %s376 = int_to_ptr.hbm [resolvable:$true] %s375
          %s377 = sshll.u32 %s369, 4
          %s378 = int_to_ptr.vmem [resolvable:$true] %s377
          %380 = dma.hbm_to_vmem [thread:$0]  %s376, 128, %s378, %s366
        $region44: #{tpu_custom_call.1} parent=35 // pred_fallthru
          _
        // Predicated region
        $region45: #{tpu_custom_call.1} parent=35 // pred_check
          %p381 = pneg %p102
        $region46: #{tpu_custom_call.1} parent=35 // pred_check_branch
          %383 = sbr.rel (%p381) target = $region48
        $region47: #{tpu_custom_call.1} parent=35 // pred_region
          %s384 = sand.u32 %s30, 1
          %s385 = scalar_lea.sflag [#allocation7], %s384
          %s386 = sand.u32 %s92, 1
          %s387 = smul.addr %s386, 8
          %s388 = scalar_lea.vmem [#allocation8], %s387
          %390 = vsyncadd %s385, 0
          %s391 = smul.addr %s30, 8
          %s392 = scalar_lea.hbm %s2, %s391
          %s394 = sshll.u32 %s392, 4
          %s395 = int_to_ptr.hbm [resolvable:$true] %s394
          %s396 = sshll.u32 %s388, 4
          %s397 = int_to_ptr.vmem [resolvable:$true] %s396
          %399 = dma.hbm_to_vmem [thread:$0]  %s395, 128, %s397, %s385
        $region48: #{tpu_custom_call.1} parent=35 // pred_fallthru
          _
      $region36: #{tpu_custom_call.1} parent=5 // pred_fallthru
        _
      %p400 = scmp.le.s32.totalorder 1, %s30
      %p401 = scmp.lt.s32.totalorder %s30, 3
      %p402 = pnand %p400, %p401
      %p403 = pneg %p402
      // Predicated region
      $region49: #{tpu_custom_call.1} parent=5 // pred_check
        _
      $region50: #{tpu_custom_call.1} parent=5 // pred_check_branch
        %405 = sbr.rel (%p402) target = $region52
      $region51: #{tpu_custom_call.1} parent=5 // pred_region
        %s406 = ssub.s32 %s30, 1
        %s407 = sand.u32 %s43, 1
        %s408 = scalar_lea.sflag [#allocation4], %s407
        %s409 = sand.u32 %s43, 1
        %s410 = smul.addr %s409, 8
        %s411 = scalar_lea.vmem [#allocation3], %s410
        // Predicated region
        $region53: #{tpu_custom_call.1} parent=51 // pred_check
          %p412 = pneg %p56
        $region54: #{tpu_custom_call.1} parent=51 // pred_check_branch
          %414 = sbr.rel (%p412) target = $region56
        $region55: #{tpu_custom_call.1} parent=51 // pred_region
          %416 = dma.done %s408, 128
        $region56: #{tpu_custom_call.1} parent=51 // pred_fallthru
          _
        %s417 = sand.u32 %s35, 1
        %s418 = scalar_lea.sflag [#allocation7], %s417
        %s419 = sand.u32 %s69, 1
        %s420 = smul.addr %s419, 8
        %s421 = scalar_lea.vmem [#allocation6], %s420
        // Predicated region
        $region57: #{tpu_custom_call.1} parent=51 // pred_check
          %p422 = pneg %p82
        $region58: #{tpu_custom_call.1} parent=51 // pred_check_branch
          %424 = sbr.rel (%p422) target = $region60
        $region59: #{tpu_custom_call.1} parent=51 // pred_region
          %426 = dma.done %s418, 128
        $region60: #{tpu_custom_call.1} parent=51 // pred_fallthru
          _
        %s427 = sand.u32 %s35, 1
        %s428 = scalar_lea.sflag [#allocation7], %s427
        %s429 = sand.u32 %s95, 1
        %s430 = smul.addr %s429, 8
        %s431 = scalar_lea.vmem [#allocation8], %s430
        // Predicated region
        $region61: #{tpu_custom_call.1} parent=51 // pred_check
          %p432 = pneg %p108
        $region62: #{tpu_custom_call.1} parent=51 // pred_check_branch
          %434 = sbr.rel (%p432) target = $region64
        $region63: #{tpu_custom_call.1} parent=51 // pred_region
          %436 = dma.done %s428, 128
        $region64: #{tpu_custom_call.1} parent=51 // pred_fallthru
          _
        // Predicated region
        $region65: #{tpu_custom_call.1} parent=51 // pred_check
          %p437 = pneg %p129
        $region66: #{tpu_custom_call.1} parent=51 // pred_check_branch
          %439 = sbr.rel (%p437) target = $region68
        $region67: #{tpu_custom_call.1} parent=51 // pred_region
          %441 = dma.done [#allocation10], 512
        $region68: #{tpu_custom_call.1} parent=51 // pred_fallthru
          _
        // Predicated region
        $region69: #{tpu_custom_call.1} parent=51 // pred_check
          %p442 = pneg %p150
        $region70: #{tpu_custom_call.1} parent=51 // pred_check_branch
          %444 = sbr.rel (%p442) target = $region72
        $region71: #{tpu_custom_call.1} parent=51 // pred_region
          %446 = dma.done [#allocation10], 512
        $region72: #{tpu_custom_call.1} parent=51 // pred_fallthru
          _
        // Predicated region
        $region73: #{tpu_custom_call.1} parent=51 // pred_check
          %p447 = pneg %p171
        $region74: #{tpu_custom_call.1} parent=51 // pred_check_branch
          %449 = sbr.rel (%p447) target = $region76
        $region75: #{tpu_custom_call.1} parent=51 // pred_region
          %451 = dma.done [#allocation13], 512
        $region76: #{tpu_custom_call.1} parent=51 // pred_fallthru
          _
        // Predicated region
        $region77: #{tpu_custom_call.1} parent=51 // pred_check
          %p452 = pneg %p192
        $region78: #{tpu_custom_call.1} parent=51 // pred_check_branch
          %454 = sbr.rel (%p452) target = $region80
        $region79: #{tpu_custom_call.1} parent=51 // pred_region
          %456 = dma.done [#allocation13], 512
        $region80: #{tpu_custom_call.1} parent=51 // pred_fallthru
          _
        %s457 = sand.u32 %s43, 1
        %s458 = scalar_lea.sflag [#allocation4], %s457
        %s459 = sand.u32 %s43, 1
        %s460 = smul.addr %s459, 8
        %s461 = scalar_lea.vmem [#allocation3], %s460
        %p462 = pneg %p56
        %p463 = pneg %p53
        %s464 = sand.u32 %s35, 1
        %s465 = scalar_lea.sflag [#allocation7], %s464
        %s466 = sand.u32 %s69, 1
        %s467 = smul.addr %s466, 8
        %s468 = scalar_lea.vmem [#allocation6], %s467
        %p469 = pneg %p82
        %p470 = pneg %p79
        %s471 = sand.u32 %s35, 1
        %s472 = scalar_lea.sflag [#allocation7], %s471
        %s473 = sand.u32 %s95, 1
        %s474 = smul.addr %s473, 8
        %s475 = scalar_lea.vmem [#allocation8], %s474
        %p476 = pneg %p108
        %p477 = pneg %p105
        %p478 = pneg %p129
        %p479 = pneg %p126
        %p480 = pneg %p150
        %p481 = pneg %p147
        %p482 = pneg %p171
        %p483 = pneg %p168
        %p484 = pneg %p192
        %p485 = pneg %p189
        %p486 = pneg %p213
        %p487 = pneg %p210
        %p488 = pneg %p239
        %p489 = pneg %p236
        %s490 = sand.u32 %s226, 1
        %s491 = scalar_lea.sflag [#allocation5], %s490
        %s492 = sand.u32 %s226, 1
        %s493 = smul.addr %s492, 8
        %s494 = scalar_lea.vmem [#allocation15], %s493
        %p495 = pneg %p265
        %p496 = pneg %p262
        %s497 = sand.u32 %s252, 1
        %s498 = scalar_lea.sflag [#allocation17], %s497
        %s499 = sand.u32 %s252, 1
        %s500 = smul.addr %s499, 32
        %s501 = scalar_lea.vmem [#allocation16], %s500
        %v502 = vld [vmem:[%s411] sm:$0xff]
        %v503 = vld [vmem:[%s421] sm:$0xff]
        %v504 = vld [vmem:[%s431] sm:$0xff]
        %v505 = vld [vmem:[#allocation9] sm:$0xff]
        %v506 = vld [vmem:[#allocation9 + $0x8] sm:$0xff]
        %v507 = vld [vmem:[#allocation9 + $0x10] sm:$0xff]
        %v508 = vld [vmem:[#allocation9 + $0x18] sm:$0xff]
        %vm509 = vcmask 261120
        %v511 = vsel %vm509, %v502, 0
        %513 = vmatpush.msra.mxu0 0.0
        %514 = vmatpush.msra.mxu0 0.0
        %515 = vmatpush.msra.mxu0 0.0
        %516 = vmatpush.msra.mxu0 0.0
        %517 = vmatpush.msra.mxu0 0.0
        %518 = vmatpush.msra.mxu0 0.0
        %519 = vmatpush.msra.mxu0 0.0
        %520 = vmatpush.msra.mxu0 0.0
        %521 = vmatpush.msra.mxu0 0.0
        %522 = vmatpush.msra.mxu0 0.0
        %523 = vmatpush.msra.mxu0 0.0
        %524 = vmatpush.msra.mxu0 0.0
        %525 = vmatpush.msra.mxu0 %v508
        %526 = vmatpush.msra.mxu0 %v507
        %527 = vmatpush.msra.mxu0 %v506
        %528 = vmatpush.msra.mxu0 %v505
        %529 = vmatmul.f32.gmra.mxu0 %v511
        %v530 = vpop.f32.mrf.mxu0
        %v531 = vadd.f32 0.0, %v530
        %532 = vdwg.mxu0
        %v533 = vld [vmem:[#allocation11] sm:$0xff]
        %v534 = vld [vmem:[#allocation11 + $0x8] sm:$0xff]
        %v535 = vld [vmem:[#allocation11 + $0x10] sm:$0xff]
        %v536 = vld [vmem:[#allocation11 + $0x18] sm:$0xff]
        %v538 = vsel %vm509, %v503, 0
        %540 = vmatpush.msra.mxu0 0.0
        %541 = vmatpush.msra.mxu0 0.0
        %542 = vmatpush.msra.mxu0 0.0
        %543 = vmatpush.msra.mxu0 0.0
        %544 = vmatpush.msra.mxu0 0.0
        %545 = vmatpush.msra.mxu0 0.0
        %546 = vmatpush.msra.mxu0 0.0
        %547 = vmatpush.msra.mxu0 0.0
        %548 = vmatpush.msra.mxu0 0.0
        %549 = vmatpush.msra.mxu0 0.0
        %550 = vmatpush.msra.mxu0 0.0
        %551 = vmatpush.msra.mxu0 0.0
        %552 = vmatpush.msra.mxu0 %v536
        %553 = vmatpush.msra.mxu0 %v535
        %554 = vmatpush.msra.mxu0 %v534
        %555 = vmatpush.msra.mxu0 %v533
        %556 = vmatmul.f32.gmra.mxu0 %v538
        %v557 = vpop.f32.mrf.mxu0
        %v558 = vadd.f32 0.0, %v557
        %559 = vdwg.mxu0
        %v560 = vld [vmem:[#allocation12] sm:$0xff]
        %v561 = vld [vmem:[#allocation12 + $0x8] sm:$0xff]
        %v562 = vld [vmem:[#allocation12 + $0x10] sm:$0xff]
        %v563 = vld [vmem:[#allocation12 + $0x18] sm:$0xff]
        %v565 = vsel %vm509, %v504, 0
        %567 = vmatpush.msra.mxu0 0.0
        %568 = vmatpush.msra.mxu0 0.0
        %569 = vmatpush.msra.mxu0 0.0
        %570 = vmatpush.msra.mxu0 0.0
        %571 = vmatpush.msra.mxu0 0.0
        %572 = vmatpush.msra.mxu0 0.0
        %573 = vmatpush.msra.mxu0 0.0
        %574 = vmatpush.msra.mxu0 0.0
        %575 = vmatpush.msra.mxu0 0.0
        %576 = vmatpush.msra.mxu0 0.0
        %577 = vmatpush.msra.mxu0 0.0
        %578 = vmatpush.msra.mxu0 0.0
        %579 = vmatpush.msra.mxu0 %v563
        %580 = vmatpush.msra.mxu0 %v562
        %581 = vmatpush.msra.mxu0 %v561
        %582 = vmatpush.msra.mxu0 %v560
        %583 = vmatmul.f32.gmra.mxu0 %v565
        %v584 = vpop.f32.mrf.mxu0
        %v585 = vadd.f32 0.0, %v584
        %586 = vdwg.mxu0
        %vm587 = vcmask 64512
        %v589 = vsel %vm587, %v531, 0
        %v592 = vsel %vm587, %v558, 0
        %594 = vmatpush.xpose.msra.mxu0 0.0
        %595 = vmatpush.xpose.msra.mxu0 0.0
        %596 = vmatpush.xpose.msra.mxu0 0.0
        %597 = vmatpush.xpose.msra.mxu0 0.0
        %598 = vmatpush.xpose.msra.mxu0 0.0
        %599 = vmatpush.xpose.msra.mxu0 0.0
        %600 = vmatpush.xpose.msra.mxu0 0.0
        %601 = vmatpush.xpose.msra.mxu0 0.0
        %602 = vmatpush.xpose.msra.mxu0 0.0
        %603 = vmatpush.xpose.msra.mxu0 0.0
        %604 = vmatpush.xpose.msra.mxu0 0.0
        %605 = vmatpush.xpose.msra.mxu0 0.0
        %606 = vmatpush.xpose.msra.mxu0 0.0
        %607 = vmatpush.xpose.msra.mxu0 0.0
        %608 = vmatpush.xpose.msra.mxu0 0.0
        %609 = vmatpush.xpose.msra.mxu0 %v592
        %610 = vmatmul.f32.gmra.mxu0 %v589
        %v611 = vpop.f32.mrf.mxu0
        %v612 = vadd.f32 0.0, %v611
        %613 = vdwg.mxu0
        %v614 = vsel %vm587, %v612, -inf
        %615 = vmax.xlane.f32.xlu0 %v614
        %v616 = vpop.xlane.xlu0 %615
        %v617 = vsub.f32 %v612, %v616
        %v618 = vmul.f32 %v617, 1.442695
        %v619 = vpow.pop %v618
        %v620 = vsel %vm587, %v619, 0.0
        %621 = vadd.xlane.f32.xlu0 %v620
        %v622 = vpop.xlane.xlu0 %621
        %v623 = vrcp.pop %v622
        %v624 = vmul.f32 %v622, %v623
        %v625 = vsub.f32 1.0, %v624
        %v626 = vmul.f32 %v623, %v625
        %v627 = vadd.f32 %v623, %v626
        %vm628 = vweird.f32 %v622
        %vm629 = vweird.f32 %v623
        %vm630 = vmor %vm628, %vm629
        %v631 = vsel %vm630, %v623, %v627
        %v632 = vand.u32 2147483647, %v622
        %vm633 = vcmp.eq.f32.partialorder %v632, 8.507059e+37
        %v634 = vand.u32 %v622, 2147483648
        %v635 = vor.u32 1.1754944e-38, %v634
        %v636 = vsel %vm633, %v635, %v631
        %v637 = vmul.f32 %v619, %v636
        %638 = vst.msk [vmem:[%s501] sm:$0xff] %vm587, %v637
        %v640 = vsel %vm587, %v637, 0
        %642 = vmatpush.msra.mxu0 0.0
        %643 = vmatpush.msra.mxu0 0.0
        %644 = vmatpush.msra.mxu0 0.0
        %645 = vmatpush.msra.mxu0 0.0
        %646 = vmatpush.msra.mxu0 0.0
        %647 = vmatpush.msra.mxu0 0.0
        %648 = vmatpush.msra.mxu0 0.0
        %649 = vmatpush.msra.mxu0 0.0
        %650 = vmatpush.msra.mxu0 0.0
        %651 = vmatpush.msra.mxu0 0.0
        %652 = vmatpush.msra.mxu0 0.0
        %653 = vmatpush.msra.mxu0 0.0
        %654 = vmatpush.msra.mxu0 0.0
        %655 = vmatpush.msra.mxu0 0.0
        %656 = vmatpush.msra.mxu0 0.0
        %657 = vmatpush.msra.mxu0 %v585
        %658 = vmatmul.f32.gmra.mxu0 %v640
        %v659 = vpop.f32.mrf.mxu0
        %v660 = vadd.f32 0.0, %v659
        %661 = vdwg.mxu0
        %662 = vst.msk [vmem:[#allocation2] sm:$0xff] %vm587, %v660
        %663 = vrot.lane.b32.xlu0 %v531, 120
        %v664 = vpop.permute.xlu0 %663
        %665 = vrot.lane.b32.xlu0 %v558, 120
        %v666 = vpop.permute.xlu0 %665
        %v667 = vsel %vm587, %v664, 0
        %v669 = vsel %vm587, %v666, 0
        %671 = vmatpush.xpose.msra.mxu0 0.0
        %672 = vmatpush.xpose.msra.mxu0 0.0
        %673 = vmatpush.xpose.msra.mxu0 0.0
        %674 = vmatpush.xpose.msra.mxu0 0.0
        %675 = vmatpush.xpose.msra.mxu0 0.0
        %676 = vmatpush.xpose.msra.mxu0 0.0
        %677 = vmatpush.xpose.msra.mxu0 0.0
        %678 = vmatpush.xpose.msra.mxu0 0.0
        %679 = vmatpush.xpose.msra.mxu0 0.0
        %680 = vmatpush.xpose.msra.mxu0 0.0
        %681 = vmatpush.xpose.msra.mxu0 0.0
        %682 = vmatpush.xpose.msra.mxu0 0.0
        %683 = vmatpush.xpose.msra.mxu0 0.0
        %684 = vmatpush.xpose.msra.mxu0 0.0
        %685 = vmatpush.xpose.msra.mxu0 0.0
        %686 = vmatpush.xpose.msra.mxu0 %v669
        %687 = vmatmul.f32.gmra.mxu0 %v667
        %v688 = vpop.f32.mrf.mxu0
        %v689 = vadd.f32 0.0, %v688
        %690 = vdwg.mxu0
        %v691 = vsel %vm587, %v689, -inf
        %692 = vmax.xlane.f32.xlu0 %v691
        %v693 = vpop.xlane.xlu0 %692
        %v694 = vsub.f32 %v689, %v693
        %v695 = vmul.f32 %v694, 1.442695
        %v696 = vpow.pop %v695
        %v697 = vsel %vm587, %v696, 0.0
        %698 = vadd.xlane.f32.xlu0 %v697
        %v699 = vpop.xlane.xlu0 %698
        %v700 = vrcp.pop %v699
        %v701 = vmul.f32 %v699, %v700
        %v702 = vsub.f32 1.0, %v701
        %v703 = vmul.f32 %v700, %v702
        %v704 = vadd.f32 %v700, %v703
        %vm705 = vweird.f32 %v699
        %vm706 = vweird.f32 %v700
        %vm707 = vmor %vm705, %vm706
        %v708 = vsel %vm707, %v700, %v704
        %v709 = vand.u32 2147483647, %v699
        %vm710 = vcmp.eq.f32.partialorder %v709, 8.507059e+37
        %v711 = vand.u32 %v699, 2147483648
        %v712 = vor.u32 1.1754944e-38, %v711
        %v713 = vsel %vm710, %v712, %v708
        %v714 = vmul.f32 %v696, %v713
        %s715 = scalar_lea.vmem %s501, 8 [#allocation16]
        %716 = vst.msk [vmem:[%s715] sm:$0xff] %vm587, %v714
        %718 = vrot.lane.b32.xlu0 %v585, 120
        %v719 = vpop.permute.xlu0 %718
        %v722 = vsel %vm587, %v714, 0
        %724 = vmatpush.msra.mxu0 0.0
        %725 = vmatpush.msra.mxu0 0.0
        %726 = vmatpush.msra.mxu0 0.0
        %727 = vmatpush.msra.mxu0 0.0
        %728 = vmatpush.msra.mxu0 0.0
        %729 = vmatpush.msra.mxu0 0.0
        %730 = vmatpush.msra.mxu0 0.0
        %731 = vmatpush.msra.mxu0 0.0
        %732 = vmatpush.msra.mxu0 0.0
        %733 = vmatpush.msra.mxu0 0.0
        %734 = vmatpush.msra.mxu0 0.0
        %735 = vmatpush.msra.mxu0 0.0
        %736 = vmatpush.msra.mxu0 0.0
        %737 = vmatpush.msra.mxu0 0.0
        %738 = vmatpush.msra.mxu0 0.0
        %739 = vmatpush.msra.mxu0 %v719
        %740 = vmatmul.f32.gmra.mxu0 %v722
        %v741 = vpop.f32.mrf.mxu0
        %v742 = vadd.f32 0.0, %v741
        %743 = vdwg.mxu0
        %745 = vrot.lane.b32.xlu0 %v742, 8
        %v746 = vpop.permute.xlu0 %745
        %vm748 = vcmask 130112
        %749 = vst.msk [vmem:[#allocation2] sm:$0xff] %vm748, %v746
        %750 = vrot.lane.b32.xlu0 %v531, 112
        %v751 = vpop.permute.xlu0 %750
        %752 = vrot.lane.b32.xlu0 %v558, 112
        %v753 = vpop.permute.xlu0 %752
        %v754 = vsel %vm587, %v751, 0
        %v756 = vsel %vm587, %v753, 0
        %758 = vmatpush.xpose.msra.mxu0 0.0
        %759 = vmatpush.xpose.msra.mxu0 0.0
        %760 = vmatpush.xpose.msra.mxu0 0.0
        %761 = vmatpush.xpose.msra.mxu0 0.0
        %762 = vmatpush.xpose.msra.mxu0 0.0
        %763 = vmatpush.xpose.msra.mxu0 0.0
        %764 = vmatpush.xpose.msra.mxu0 0.0
        %765 = vmatpush.xpose.msra.mxu0 0.0
        %766 = vmatpush.xpose.msra.mxu0 0.0
        %767 = vmatpush.xpose.msra.mxu0 0.0
        %768 = vmatpush.xpose.msra.mxu0 0.0
        %769 = vmatpush.xpose.msra.mxu0 0.0
        %770 = vmatpush.xpose.msra.mxu0 0.0
        %771 = vmatpush.xpose.msra.mxu0 0.0
        %772 = vmatpush.xpose.msra.mxu0 0.0
        %773 = vmatpush.xpose.msra.mxu0 %v756
        %774 = vmatmul.f32.gmra.mxu0 %v754
        %v775 = vpop.f32.mrf.mxu0
        %v776 = vadd.f32 0.0, %v775
        %777 = vdwg.mxu0
        %v778 = vsel %vm587, %v776, -inf
        %779 = vmax.xlane.f32.xlu0 %v778
        %v780 = vpop.xlane.xlu0 %779
        %v781 = vsub.f32 %v776, %v780
        %v782 = vmul.f32 %v781, 1.442695
        %v783 = vpow.pop %v782
        %v784 = vsel %vm587, %v783, 0.0
        %785 = vadd.xlane.f32.xlu0 %v784
        %v786 = vpop.xlane.xlu0 %785
        %v787 = vrcp.pop %v786
        %v788 = vmul.f32 %v786, %v787
        %v789 = vsub.f32 1.0, %v788
        %v790 = vmul.f32 %v787, %v789
        %v791 = vadd.f32 %v787, %v790
        %vm792 = vweird.f32 %v786
        %vm793 = vweird.f32 %v787
        %vm794 = vmor %vm792, %vm793
        %v795 = vsel %vm794, %v787, %v791
        %v796 = vand.u32 2147483647, %v786
        %vm797 = vcmp.eq.f32.partialorder %v796, 8.507059e+37
        %v798 = vand.u32 %v786, 2147483648
        %v799 = vor.u32 1.1754944e-38, %v798
        %v800 = vsel %vm797, %v799, %v795
        %v801 = vmul.f32 %v783, %v800
        %s802 = scalar_lea.vmem %s501, 16 [#allocation16]
        %803 = vst.msk [vmem:[%s802] sm:$0xff] %vm587, %v801
        %804 = vrot.lane.b32.xlu0 %v585, 112
        %v805 = vpop.permute.xlu0 %804
        %v808 = vsel %vm587, %v801, 0
        %810 = vmatpush.msra.mxu0 0.0
        %811 = vmatpush.msra.mxu0 0.0
        %812 = vmatpush.msra.mxu0 0.0
        %813 = vmatpush.msra.mxu0 0.0
        %814 = vmatpush.msra.mxu0 0.0
        %815 = vmatpush.msra.mxu0 0.0
        %816 = vmatpush.msra.mxu0 0.0
        %817 = vmatpush.msra.mxu0 0.0
        %818 = vmatpush.msra.mxu0 0.0
        %819 = vmatpush.msra.mxu0 0.0
        %820 = vmatpush.msra.mxu0 0.0
        %821 = vmatpush.msra.mxu0 0.0
        %822 = vmatpush.msra.mxu0 0.0
        %823 = vmatpush.msra.mxu0 0.0
        %824 = vmatpush.msra.mxu0 0.0
        %825 = vmatpush.msra.mxu0 %v805
        %826 = vmatmul.f32.gmra.mxu0 %v808
        %v827 = vpop.f32.mrf.mxu0
        %v828 = vadd.f32 0.0, %v827
        %829 = vdwg.mxu0
        %831 = vrot.lane.b32.xlu0 %v828, 16
        %v832 = vpop.permute.xlu0 %831
        %vm834 = vcmask 195712
        %835 = vst.msk [vmem:[#allocation2] sm:$0xff] %vm834, %v832
        %836 = vrot.lane.b32.xlu0 %v531, 104
        %v837 = vpop.permute.xlu0 %836
        %838 = vrot.lane.b32.xlu0 %v558, 104
        %v839 = vpop.permute.xlu0 %838
        %v840 = vsel %vm587, %v837, 0
        %v842 = vsel %vm587, %v839, 0
        %844 = vmatpush.xpose.msra.mxu0 0.0
        %845 = vmatpush.xpose.msra.mxu0 0.0
        %846 = vmatpush.xpose.msra.mxu0 0.0
        %847 = vmatpush.xpose.msra.mxu0 0.0
        %848 = vmatpush.xpose.msra.mxu0 0.0
        %849 = vmatpush.xpose.msra.mxu0 0.0
        %850 = vmatpush.xpose.msra.mxu0 0.0
        %851 = vmatpush.xpose.msra.mxu0 0.0
        %852 = vmatpush.xpose.msra.mxu0 0.0
        %853 = vmatpush.xpose.msra.mxu0 0.0
        %854 = vmatpush.xpose.msra.mxu0 0.0
        %855 = vmatpush.xpose.msra.mxu0 0.0
        %856 = vmatpush.xpose.msra.mxu0 0.0
        %857 = vmatpush.xpose.msra.mxu0 0.0
        %858 = vmatpush.xpose.msra.mxu0 0.0
        %859 = vmatpush.xpose.msra.mxu0 %v842
        %860 = vmatmul.f32.gmra.mxu0 %v840
        %v861 = vpop.f32.mrf.mxu0
        %v862 = vadd.f32 0.0, %v861
        %863 = vdwg.mxu0
        %v864 = vsel %vm587, %v862, -inf
        %865 = vmax.xlane.f32.xlu0 %v864
        %v866 = vpop.xlane.xlu0 %865
        %v867 = vsub.f32 %v862, %v866
        %v868 = vmul.f32 %v867, 1.442695
        %v869 = vpow.pop %v868
        %v870 = vsel %vm587, %v869, 0.0
        %871 = vadd.xlane.f32.xlu0 %v870
        %v872 = vpop.xlane.xlu0 %871
        %v873 = vrcp.pop %v872
        %v874 = vmul.f32 %v872, %v873
        %v875 = vsub.f32 1.0, %v874
        %v876 = vmul.f32 %v873, %v875
        %v877 = vadd.f32 %v873, %v876
        %vm878 = vweird.f32 %v872
        %vm879 = vweird.f32 %v873
        %vm880 = vmor %vm878, %vm879
        %v881 = vsel %vm880, %v873, %v877
        %v882 = vand.u32 2147483647, %v872
        %vm883 = vcmp.eq.f32.partialorder %v882, 8.507059e+37
        %v884 = vand.u32 %v872, 2147483648
        %v885 = vor.u32 1.1754944e-38, %v884
        %v886 = vsel %vm883, %v885, %v881
        %v887 = vmul.f32 %v869, %v886
        %s888 = scalar_lea.vmem %s501, 24 [#allocation16]
        %889 = vst.msk [vmem:[%s888] sm:$0xff] %vm587, %v887
        %890 = vrot.lane.b32.xlu0 %v585, 104
        %v891 = vpop.permute.xlu0 %890
        %v894 = vsel %vm587, %v887, 0
        %896 = vmatpush.msra.mxu0 0.0
        %897 = vmatpush.msra.mxu0 0.0
        %898 = vmatpush.msra.mxu0 0.0
        %899 = vmatpush.msra.mxu0 0.0
        %900 = vmatpush.msra.mxu0 0.0
        %901 = vmatpush.msra.mxu0 0.0
        %902 = vmatpush.msra.mxu0 0.0
        %903 = vmatpush.msra.mxu0 0.0
        %904 = vmatpush.msra.mxu0 0.0
        %905 = vmatpush.msra.mxu0 0.0
        %906 = vmatpush.msra.mxu0 0.0
        %907 = vmatpush.msra.mxu0 0.0
        %908 = vmatpush.msra.mxu0 0.0
        %909 = vmatpush.msra.mxu0 0.0
        %910 = vmatpush.msra.mxu0 0.0
        %911 = vmatpush.msra.mxu0 %v891
        %912 = vmatmul.f32.gmra.mxu0 %v894
        %v913 = vpop.f32.mrf.mxu0
        %v914 = vadd.f32 0.0, %v913
        %915 = vdwg.mxu0
        %917 = vrot.lane.b32.xlu0 %v914, 24
        %v918 = vpop.permute.xlu0 %917
        %vm920 = vcmask 261312
        %921 = vst.msk [vmem:[#allocation2] sm:$0xff] %vm920, %v918
        %v922 = vld [vmem:[#allocation2] sm:$0xff]
        %v923 = vld [vmem:[#allocation14] sm:$0xff]
        %v924 = vld [vmem:[#allocation14 + $0x8] sm:$0xff]
        %v925 = vld [vmem:[#allocation14 + $0x10] sm:$0xff]
        %v926 = vld [vmem:[#allocation14 + $0x18] sm:$0xff]
        %v927 = vld [vmem:[%s7] sm:$0x1]
        %v929 = vperm.slane %v927, 0
        %v932 = vsel %vm509, %v922, 0
        %934 = vmatpush.msra.mxu0 0.0
        %935 = vmatpush.msra.mxu0 0.0
        %936 = vmatpush.msra.mxu0 0.0
        %937 = vmatpush.msra.mxu0 0.0
        %938 = vmatpush.msra.mxu0 0.0
        %939 = vmatpush.msra.mxu0 0.0
        %940 = vmatpush.msra.mxu0 0.0
        %941 = vmatpush.msra.mxu0 0.0
        %942 = vmatpush.msra.mxu0 0.0
        %943 = vmatpush.msra.mxu0 0.0
        %944 = vmatpush.msra.mxu0 0.0
        %945 = vmatpush.msra.mxu0 0.0
        %946 = vmatpush.msra.mxu0 %v926
        %947 = vmatpush.msra.mxu0 %v925
        %948 = vmatpush.msra.mxu0 %v924
        %949 = vmatpush.msra.mxu0 %v923
        %950 = vmatmul.f32.gmra.mxu0 %v932
        %v951 = vpop.f32.mrf.mxu0
        %v952 = vadd.f32 %v929, %v951
        %953 = vdwg.mxu0
        %954 = vst.msk [vmem:[%s494] sm:$0xff] %vm509, %v952
        %s955 = sand.u32 %s226, 1
        %s956 = scalar_lea.sflag [#allocation5], %s955
        %s957 = sand.u32 %s226, 1
        %s958 = smul.addr %s957, 8
        %s959 = scalar_lea.vmem [#allocation15], %s958
        %s960 = sand.u32 %s252, 1
        %s961 = scalar_lea.sflag [#allocation17], %s960
        %s962 = sand.u32 %s252, 1
        %s963 = smul.addr %s962, 32
        %s964 = scalar_lea.vmem [#allocation16], %s963
        // Predicated region
        $region81: #{tpu_custom_call.1} parent=51 // pred_check
          %p965 = pneg %p236
        $region82: #{tpu_custom_call.1} parent=51 // pred_check_branch
          %967 = sbr.rel (%p965) target = $region84
        $region83: #{tpu_custom_call.1} parent=51 // pred_region
          %969 = vsyncadd %s956, 0
          %s970 = smul.addr %s35, 8
          %s971 = scalar_lea.hbm %s8, %s970
          %s973 = sshll.u32 %s959, 4
          %s974 = int_to_ptr.vmem [resolvable:$true] %s973
          %s975 = sshll.u32 %s971, 4
          %s976 = int_to_ptr.hbm [resolvable:$true] %s975
          %978 = dma.vmem_to_hbm [thread:$0]  %s974, 128, %s976, %s956
        $region84: #{tpu_custom_call.1} parent=51 // pred_fallthru
          _
        // Predicated region
        $region85: #{tpu_custom_call.1} parent=51 // pred_check
          %p979 = pneg %p262
        $region86: #{tpu_custom_call.1} parent=51 // pred_check_branch
          %981 = sbr.rel (%p979) target = $region88
        $region87: #{tpu_custom_call.1} parent=51 // pred_region
          %983 = vsyncadd %s961, 0
          %s984 = smul.addr %s35, 4
          %s985 = smul.addr %s984, 8
          %s986 = scalar_lea.hbm %s9, %s985
          %s987 = sshll.u32 %s964, 4
          %s988 = int_to_ptr.vmem [resolvable:$true] %s987
          %s989 = sshll.u32 %s986, 4
          %s990 = int_to_ptr.hbm [resolvable:$true] %s989
          %995 = dma.vmem_to_hbm [thread:$0]  %s988, 512, %s990, %s961, 128, 128, 8
        $region88: #{tpu_custom_call.1} parent=51 // pred_fallthru
          _
      $region52: #{tpu_custom_call.1} parent=5 // pred_fallthru
        _
      %p996 = scmp.le.s32.totalorder 2, %s30
      // Predicated region
      $region89: #{tpu_custom_call.1} parent=5 // pred_check
        %p997 = pneg %p996
      $region90: #{tpu_custom_call.1} parent=5 // pred_check_branch
        %999 = sbr.rel (%p997) target = $region92
      $region91: #{tpu_custom_call.1} parent=5 // pred_region
        %s1000 = ssub.s32 %s30, 2
        // Predicated region
        $region93: #{tpu_custom_call.1} parent=91 // pred_check
          %p1001 = pneg %p242
        $region94: #{tpu_custom_call.1} parent=91 // pred_check_branch
          %1003 = sbr.rel (%p1001) target = $region96
        $region95: #{tpu_custom_call.1} parent=91 // pred_region
          %s1004 = sand.u32 %s227, 1
          %s1005 = scalar_lea.sflag [#allocation5], %s1004
          %s1006 = sand.u32 %s227, 1
          %s1007 = smul.addr %s1006, 8
          %s1008 = scalar_lea.vmem [#allocation15], %s1007
          %1010 = dma.done %s1005, 128
        $region96: #{tpu_custom_call.1} parent=91 // pred_fallthru
          _
        // Predicated region
        $region97: #{tpu_custom_call.1} parent=91 // pred_check
          %p1011 = pneg %p268
        $region98: #{tpu_custom_call.1} parent=91 // pred_check_branch
          %1013 = sbr.rel (%p1011) target = $region100
        $region99: #{tpu_custom_call.1} parent=91 // pred_region
          %s1014 = sand.u32 %s253, 1
          %s1015 = scalar_lea.sflag [#allocation17], %s1014
          %s1016 = sand.u32 %s253, 1
          %s1017 = smul.addr %s1016, 32
          %s1018 = scalar_lea.vmem [#allocation16], %s1017
          %1020 = dma.done %s1015, 512
        $region100: #{tpu_custom_call.1} parent=91 // pred_fallthru
          _
      $region92: #{tpu_custom_call.1} parent=5 // pred_fallthru
        _
    $region6: #{tpu_custom_call.1} parent=1 // loop_footer
      %s34 = sadd.s32 1, %s30
    $region7: #{tpu_custom_call.1} parent=1 // loop_footer_branch
      %29 = sbr.rel target = $region3
    $region8: #{tpu_custom_call.1} parent=1 // loop_exit
      _
    %1021 = vsyncpa [#allocation4], 1
    %s1022 = scalar_lea.sflag [#allocation4], 1
    %1023 = vsyncpa %s1022, 1
    %1024 = vsyncpa [#allocation7], 1
    %s1025 = scalar_lea.sflag [#allocation7], 1
    %1026 = vsyncpa %s1025, 1
    %1027 = vsyncpa [#allocation10], 1
    %1028 = vsyncpa [#allocation13], 1
    %1029 = vsyncpa [#allocation5], 1
    %s1030 = scalar_lea.sflag [#allocation5], 1
    %1031 = vsyncpa %s1030, 1
    %1032 = vsyncpa [#allocation17], 1
    %s1033 = scalar_lea.sflag [#allocation17], 1
    %1034 = vsyncpa %s1033, 1

</llo_original>
